<compile_context>
chip_gen: v6e
topology: v6e:2x2x1
jax: 0.10.0
libtpu: 0.0.40
codegen_flags: <defaults>
</compile_context>

<pallas_src>
from functools import partial
from math import pi, sqrt

import jax
import jax.numpy as jnp
from jax.experimental import pallas as pl
from jax.experimental.pallas import tpu as pltpu


def _rff_kernel(xT_ref, w_inT_ref, b_in_ref, w_outT_ref, o_ref, *, out_via_reduce):
    # ---- RffLayer: projection on the MXU; batch on lanes keeps everything lane-dense ----
    pre = jnp.dot(w_inT_ref[...], xT_ref[...],
                  preferred_element_type=jnp.float32)          # (H, tb) f32  (1/lengthscale folded)
    h = jnp.cos(pre + b_in_ref[...])                           # bias (H, 1) broadcast over lanes

    # ---- LinearLayer (fixed posterior weight sample); sqrt(2/H) folded into w_out ----
    if out_via_reduce:
        # dim_out == 1: weighted sublane reduction avoids a degenerate M=1 matmul.
        y = jnp.sum(h * w_outT_ref[...], axis=0, keepdims=True)                 # (1, tb)
    else:
        y = jnp.dot(w_outT_ref[...], h, preferred_element_type=jnp.float32)     # (dim_out, tb)
    o_ref[...] = y.astype(o_ref.dtype)


def rff_forward(x, w_in, b_in, w_out, *, lengthscale=1.0, tb=None):
    """Rff forward: y = (sqrt(2/H) * cos(x @ W_in / lengthscale + b_in)) @ w_out.

    x: (N, dim_in); w_in: (dim_in, H); b_in: (H,); w_out: (H, dim_out).  Returns (N, dim_out) f32.
    """
    n, dim_in = x.shape
    dim_hidden = w_in.shape[1]
    dim_out = w_out.shape[1]

    # Batch tile: multiple of 128 (lane-dense stores) and grid >= 2 (v7x: both TensorCores busy)
    # whenever the batch allows; otherwise fall back to a single full-array block.
    if tb is None:
        tb = n
        for cand in (2048, 1024, 512, 256, 128):
            if n % cand == 0 and n // cand >= 2:
                tb = cand
                break
    assert n % tb == 0, "batch size must be divisible by the tile size"
    grid = (n // tb,)
    # VMEM footprint at tb=2048, H=32 is < 1 MiB, far under the scoped default on all chips;
    # bump pltpu.CompilerParams(vmem_limit_bytes=...) only if dim_hidden grows to the thousands.

    # One-time weight transforms (fold per-element scalars out of the kernel, transpose for the
    # batch-on-lanes layout). Weights are tiny and resident; x streams in its native dtype.
    x_t = x.T                                                                  # (dim_in, N)
    w_in_t = (w_in.T * jnp.float32(1.0 / lengthscale)).astype(x.dtype)          # (H, dim_in)
    b_in_c = b_in.reshape(dim_hidden, 1).astype(jnp.float32)                    # (H, 1)
    w_out_s = (jnp.float32(sqrt(2.0 / dim_hidden)) * w_out).astype(jnp.float32)

    out_via_reduce = (dim_out == 1)
    if out_via_reduce:
        w_out_k = w_out_s.reshape(dim_hidden, 1)                                # (H, 1)
        w_out_spec = pl.BlockSpec((dim_hidden, 1), lambda i: (0, 0))
    else:
        w_out_k = w_out_s.T                                                     # (dim_out, H)
        w_out_spec = pl.BlockSpec((dim_out, dim_hidden), lambda i: (0, 0))

    flops = 2 * n * dim_hidden * (dim_in + dim_out)
    bytes_accessed = int(
        x.size * x.dtype.itemsize + w_in_t.size * w_in_t.dtype.itemsize
        + b_in_c.size * 4 + w_out_k.size * 4 + n * dim_out * 4)

    y_t = pl.pallas_call(
        partial(_rff_kernel, out_via_reduce=out_via_reduce),
        out_shape=jax.ShapeDtypeStruct((dim_out, n), jnp.float32),
        grid=grid,
        in_specs=[
            pl.BlockSpec((dim_in, tb), lambda i: (0, i)),          # x tile (streamed)
            pl.BlockSpec((dim_hidden, dim_in), lambda i: (0, 0)),  # W_in^T / lengthscale (resident)
            pl.BlockSpec((dim_hidden, 1), lambda i: (0, 0)),       # b_in (resident)
            w_out_spec,                                            # scaled w_out (resident)
        ],
        out_specs=pl.BlockSpec((dim_out, tb), lambda i: (0, i)),   # lane-dense output slab
        compiler_params=pltpu.CompilerParams(
            dimension_semantics=("parallel",)),
        cost_estimate=pl.CostEstimate(
            flops=flops,
            transcendentals=n * dim_hidden,
            bytes_accessed=bytes_accessed),
    )(x_t, w_in_t, b_in_c, w_out_k)

    return y_t.T  # (N, dim_out); for dim_out == 1 this is just a reshape.


if __name__ == "__main__":
    # Small shapes consistent with the module: dim_in=4, dim_hidden=32, dim_out=1.
    dim_in, dim_hidden, dim_out = 4, 32, 1
    lengthscale = 1.5
    prior_w2_sig2 = 1.0
    noise_sig2 = 0.1  # used only in fixed_point_updates / loss, not in forward

    key = jax.random.PRNGKey(0)
    k_x, k_w1, k_b1, k_w2, k_x2 = jax.random.split(key, 5)

    # RffLayer parameters: W ~ N(0, I), b ~ U(0, 2*pi).
    w_in = jax.random.normal(k_w1, (dim_in, dim_hidden), dtype=jnp.float32)
    b_in = jax.random.uniform(k_b1, (dim_hidden,), minval=0.0, maxval=2.0 * pi,
                              dtype=jnp.float32)
    # LinearLayer "sample_post" weight.
    # TODO(synk): the true 'sample_post' draws from the data-dependent MVN posterior computed by
    # fixed_point_updates; a deterministic prior-scale sample stands in here.
    w_out = sqrt(prior_w2_sig2) * jax.random.normal(k_w2, (dim_hidden, dim_out),
                                                    dtype=jnp.float32)

    def reference(x):
        h = sqrt(2.0 / dim_hidden) * jnp.cos(x @ w_in / lengthscale + b_in[None, :])
        return h @ w_out

    # Case 1: tiny batch (grid of 1, full-array blocks) — matches the module's toy sizes.
    x_small = jax.random.normal(k_x, (8, dim_in), dtype=jnp.float32)
    y_small = jax.block_until_ready(
        rff_forward(x_small, w_in, b_in, w_out, lengthscale=lengthscale))
    assert y_small.shape == (8, dim_out)
    assert jnp.allclose(y_small, reference(x_small), atol=1e-5, rtol=1e-5)

    # Case 2: larger batch exercising the tiled, pipelined path (tb=256, grid=2).
    x_big = jax.random.normal(k_x2, (512, dim_in), dtype=jnp.float32)
    y_big = jax.block_until_ready(
        rff_forward(x_big, w_in, b_in, w_out, lengthscale=lengthscale))
    assert y_big.shape == (512, dim_out)
    assert jnp.allclose(y_big, reference(x_big), atol=1e-5, rtol=1e-5)

    print("KERNEL_OK")
</pallas_src>

<mosaic_0001>
module attributes {stable_mosaic.version = 11 : i64} {
  func.func @_rff_kernel(%arg0: i32, %arg1: memref<4x8xf32, #tpu.memory_space<vmem>>, %arg2: memref<32x4xf32, #tpu.memory_space<vmem>>, %arg3: memref<32x1xf32, #tpu.memory_space<vmem>>, %arg4: memref<32x1xf32, #tpu.memory_space<vmem>>, %arg5: memref<1x8xf32, #tpu.memory_space<vmem>>) attributes {dimension_semantics = [#tpu.dimension_semantics<parallel>], iteration_bounds = array<i64: 1>, scalar_prefetch = 0 : i64, scratch_operands = 0 : i64, tpu.core_type = #tpu.core_type<tc>, window_params = [{transform_indices = @transform_0, window_bounds = array<i64: 4, 8>}, {pipeline_mode = #tpu.pipeline_mode<synchronous>, transform_indices = @transform_1, window_bounds = array<i64: 32, 4>}, {pipeline_mode = #tpu.pipeline_mode<synchronous>, transform_indices = @transform_2, window_bounds = array<i64: 32, 1>}, {pipeline_mode = #tpu.pipeline_mode<synchronous>, transform_indices = @transform_3, window_bounds = array<i64: 32, 1>}, {transform_indices = @transform_4, window_bounds = array<i64: 1, 8>}]} {
    %c0 = arith.constant 0 : index
    %c0_0 = arith.constant 0 : index
    %0 = vector.load %arg2[%c0, %c0_0] : memref<32x4xf32, #tpu.memory_space<vmem>>, vector<32x4xf32>
    %c0_1 = arith.constant 0 : index
    %c0_2 = arith.constant 0 : index
    %1 = vector.load %arg1[%c0_1, %c0_2] : memref<4x8xf32, #tpu.memory_space<vmem>>, vector<4x8xf32>
    %cst = arith.constant dense<0.000000e+00> : vector<32x8xf32>
    %2 = tpu.matmul %0, %1, %cst {dimension_numbers = #tpu.dot_dimension_numbers<[1], [0], [0], [1], [0, 0, 1, 1], [], []>} : vector<32x4xf32>, vector<4x8xf32>, vector<32x8xf32> -> vector<32x8xf32>
    %c0_3 = arith.constant 0 : index
    %c0_4 = arith.constant 0 : index
    %3 = vector.load %arg3[%c0_3, %c0_4] : memref<32x1xf32, #tpu.memory_space<vmem>>, vector<32x1xf32>
    %4 = vector.broadcast %3 : vector<32x1xf32> to vector<32x8xf32>
    %5 = arith.addf %2, %4 : vector<32x8xf32>
    %6 = math.cos %5 : vector<32x8xf32>
    %c0_5 = arith.constant 0 : index
    %c0_6 = arith.constant 0 : index
    %7 = vector.load %arg4[%c0_5, %c0_6] : memref<32x1xf32, #tpu.memory_space<vmem>>, vector<32x1xf32>
    %8 = vector.broadcast %7 : vector<32x1xf32> to vector<32x8xf32>
    %9 = arith.mulf %6, %8 : vector<32x8xf32>
    %cst_7 = arith.constant dense<0.000000e+00> : vector<8xf32>
    %10 = vector.multi_reduction <add>, %9, %cst_7 [0] : vector<32x8xf32> to vector<8xf32>
    %11 = vector.shape_cast %10 : vector<8xf32> to vector<1x8xf32>
    %c0_8 = arith.constant 0 : index
    %c0_9 = arith.constant 0 : index
    %12 = vector.load %arg5[%c0_8, %c0_9] : memref<1x8xf32, #tpu.memory_space<vmem>>, vector<1x8xf32>
    tpu.vector_store %arg5[%c0_8, %c0_9], %11 {strides = array<i32>} : memref<1x8xf32, #tpu.memory_space<vmem>>, vector<1x8xf32>,
    return
  }
  func.func @transform_0(%arg0: i32) -> (i32, i32) {
    %c0_i32 = arith.constant 0 : i32
    %c0_i32_0 = arith.constant 0 : i32
    return %c0_i32, %arg0 : i32, i32
  }
  func.func @transform_1(%arg0: i32) -> (i32, i32) {
    %c0_i32 = arith.constant 0 : i32
    %c0_i32_0 = arith.constant 0 : i32
    %c0_i32_1 = arith.constant 0 : i32
    return %c0_i32, %c0_i32_0 : i32, i32
  }
  func.func @transform_2(%arg0: i32) -> (i32, i32) {
    %c0_i32 = arith.constant 0 : i32
    %c0_i32_0 = arith.constant 0 : i32
    %c0_i32_1 = arith.constant 0 : i32
    return %c0_i32, %c0_i32_0 : i32, i32
  }
  func.func @transform_3(%arg0: i32) -> (i32, i32) {
    %c0_i32 = arith.constant 0 : i32
    %c0_i32_0 = arith.constant 0 : i32
    %c0_i32_1 = arith.constant 0 : i32
    return %c0_i32, %c0_i32_0 : i32, i32
  }
  func.func @transform_4(%arg0: i32) -> (i32, i32) {
    %c0_i32 = arith.constant 0 : i32
    %c0_i32_0 = arith.constant 0 : i32
    return %c0_i32, %arg0 : i32, i32
  }
}

</mosaic_0001>

<llo_original>
// kernel: tpu_custom_call.1
$region0: #{tpu_custom_call.1}
  #allocation0 [shape = 'u32[]', space=smem, size = 0x4, offset = 0x4, fixed_abs, tag = 'smem constant byte address 0x4 - core index']
  #allocation1 [shape = 'u32[144,128]{1,0:T(1,128)}', space=vmem, size = 0x12000, scoped, tag = 'internal scratch']
  %s0 = inlined_call_operand.vmem [shape: f32[4,8], index: 0, kind: input, shape index: {}]
  %s1 = inlined_call_operand.vmem [shape: f32[32,4], index: 1, kind: input, shape index: {}]
  %s2 = inlined_call_operand.vmem [shape: f32[32,1], index: 2, kind: input, shape index: {}]
  %s3 = inlined_call_operand.vmem [shape: f32[32,1], index: 3, kind: input, shape index: {}]
  %s4 = inlined_call_operand.hbm [shape: f32[1,8], index: 4, kind: output, shape index: {}]
  %s5 = sld [smem:[#allocation0]]
  $region26: #{tpu_custom_call.1} parent=0
    _
  %s7 = ssub.s32 1, %s5
  %s8 = scalar_select 0, %s7, %s5
  $region1: #{tpu_custom_call.1} parent=0
    #allocation2 [shape = 'u8[512]{0}', space=vmem, size = 0x400, scoped, tag = 'output window, operand 0, single buffered']
    #allocation3 [shape = 's32[1]{0}', space=sflag, size = 0x4, scoped, tag = 'scoped memory for tpu_custom_call.1']
    %9 = vsyncpa [#allocation3], 0
    // Predicated region
    $region2: #{tpu_custom_call.1} parent=1 // pred_check
      _
    $region3: #{tpu_custom_call.1} parent=1 // pred_check_branch
      %11 = sbr.rel (0) target = $region5
    $region4: #{tpu_custom_call.1} parent=1 // pred_region
      _
    $region5: #{tpu_custom_call.1} parent=1 // pred_fallthru
      _
    // Predicated region
    $region6: #{tpu_custom_call.1} parent=1 // pred_check
      _
    $region7: #{tpu_custom_call.1} parent=1 // pred_check_branch
      %13 = sbr.rel (0) target = $region9
    $region8: #{tpu_custom_call.1} parent=1 // pred_region
      _
    $region9: #{tpu_custom_call.1} parent=1 // pred_fallthru
      _
    // Predicated region
    $region10: #{tpu_custom_call.1} parent=1 // pred_check
      _
    $region11: #{tpu_custom_call.1} parent=1 // pred_check_branch
      %15 = sbr.rel (0) target = $region13
    $region12: #{tpu_custom_call.1} parent=1 // pred_region
      _
    $region13: #{tpu_custom_call.1} parent=1 // pred_fallthru
      _
    // Predicated region
    $region14: #{tpu_custom_call.1} parent=1 // pred_check
      _
    $region15: #{tpu_custom_call.1} parent=1 // pred_check_branch
      %17 = sbr.rel (0) target = $region17
    $region16: #{tpu_custom_call.1} parent=1 // pred_region
      _
    $region17: #{tpu_custom_call.1} parent=1 // pred_fallthru
      _
    %v18 = vld [vmem:[%s1] sm:$0xff]
    %v19 = vld [vmem:[%s1 + $0x8] sm:$0xff]
    %v20 = vld [vmem:[%s1 + $0x10] sm:$0xff]
    %v21 = vld [vmem:[%s1 + $0x18] sm:$0xff]
    %v22 = vld [vmem:[%s0] sm:$0xf]
    %v23 = vld [vmem:[%s2] sm:$0xff]
    %v24 = vld [vmem:[%s2 + $0x8] sm:$0xff]
    %v25 = vld [vmem:[%s2 + $0x10] sm:$0xff]
    %v26 = vld [vmem:[%s2 + $0x18] sm:$0xff]
    %28 = vset.pattern.permute.xlu0 0
    %29 = vperm.xlu0 %28, %v23
    %v30 = vpop.permute.xlu0 %29
    %33 = vset.pattern.permute.xlu0 0
    %34 = vperm.xlu0 %33, %v24
    %v35 = vpop.permute.xlu0 %34
    %38 = vset.pattern.permute.xlu0 0
    %39 = vperm.xlu0 %38, %v25
    %v40 = vpop.permute.xlu0 %39
    %43 = vset.pattern.permute.xlu0 0
    %44 = vperm.xlu0 %43, %v26
    %v45 = vpop.permute.xlu0 %44
    %vm47 = vcmask 31744
    %v49 = vsel %vm47, %v18, 0
    %v52 = vsel %vm47, %v19, 0
    %v55 = vsel %vm47, %v20, 0
    %v58 = vsel %vm47, %v21, 0
    %vm60 = vcmask 1043456
    %v62 = vsel %vm60, %v22, 0
    %64 = vmatprep.subr.mxu0 0.0
    %65 = vmatpush1.msra.mxu0 0.0
    %66 = vmatprep.subr.mxu0 0.0
    %67 = vmatpush1.msra.mxu0 0.0
    %68 = vmatprep.subr.mxu0 0.0
    %69 = vmatpush1.msra.mxu0 0.0
    %70 = vmatprep.subr.mxu0 0.0
    %71 = vmatpush1.msra.mxu0 0.0
    %72 = vmatprep.subr.mxu0 0.0
    %73 = vmatpush1.msra.mxu0 0.0
    %74 = vmatprep.subr.mxu0 0.0
    %75 = vmatpush1.msra.mxu0 0.0
    %76 = vmatprep.subr.mxu0 0.0
    %77 = vmatpush1.msra.mxu0 0.0
    %78 = vmatprep.subr.mxu0 0.0
    %79 = vmatpush1.msra.mxu0 0.0
    %80 = vmatprep.subr.mxu0 0.0
    %81 = vmatpush1.msra.mxu0 0.0
    %82 = vmatprep.subr.mxu0 0.0
    %83 = vmatpush1.msra.mxu0 0.0
    %84 = vmatprep.subr.mxu0 0.0
    %85 = vmatpush1.msra.mxu0 0.0
    %86 = vmatprep.subr.mxu0 0.0
    %87 = vmatpush1.msra.mxu0 0.0
    %88 = vmatprep.subr.mxu0 0.0
    %89 = vmatpush1.msra.mxu0 0.0
    %90 = vmatprep.subr.mxu0 0.0
    %91 = vmatpush1.msra.mxu0 0.0
    %92 = vmatprep.subr.mxu0 0.0
    %93 = vmatpush1.msra.mxu0 0.0
    %94 = vmatprep.subr.mxu0 0.0
    %95 = vmatpush1.msra.mxu0 %v62
    %96 = vmatprep.subr.mxu0 0.0
    %97 = vmatpush2.msra.mxu0 0.0
    %98 = vmatprep.subr.mxu0 0.0
    %99 = vmatpush2.msra.mxu0 0.0
    %100 = vmatprep.subr.mxu0 0.0
    %101 = vmatpush2.msra.mxu0 0.0
    %102 = vmatprep.subr.mxu0 0.0
    %103 = vmatpush2.msra.mxu0 0.0
    %104 = vmatprep.subr.mxu0 0.0
    %105 = vmatpush2.msra.mxu0 0.0
    %106 = vmatprep.subr.mxu0 0.0
    %107 = vmatpush2.msra.mxu0 0.0
    %108 = vmatprep.subr.mxu0 0.0
    %109 = vmatpush2.msra.mxu0 0.0
    %110 = vmatprep.subr.mxu0 0.0
    %111 = vmatpush2.msra.mxu0 0.0
    %112 = vmatprep.subr.mxu0 0.0
    %113 = vmatpush2.msra.mxu0 0.0
    %114 = vmatprep.subr.mxu0 0.0
    %115 = vmatpush2.msra.mxu0 0.0
    %116 = vmatprep.subr.mxu0 0.0
    %117 = vmatpush2.msra.mxu0 0.0
    %118 = vmatprep.subr.mxu0 0.0
    %119 = vmatpush2.msra.mxu0 0.0
    %120 = vmatprep.subr.mxu0 0.0
    %121 = vmatpush2.msra.mxu0 0.0
    %122 = vmatprep.subr.mxu0 0.0
    %123 = vmatpush2.msra.mxu0 0.0
    %124 = vmatprep.subr.mxu0 0.0
    %125 = vmatpush2.msra.mxu0 0.0
    %126 = vmatprep.subr.mxu0 0.0
    %127 = vmatpush2.msra.mxu0 0.0
    %128 = vmatprep.mubr.f32.mxu0 0.0
    %129 = vmatmul.mubr.f32.gmra.mxu0 %v49
    %v130 = vpop.f32.mrf.mxu0
    %v131 = vadd.f32 %v30, %v130
    %v132 = vpop.f32.mrf.mxu0
    %133 = vmatprep.mubr.f32.mxu0 0.0
    %134 = vmatmul.mubr.f32.gmra.mxu0 %v52
    %v135 = vpop.f32.mrf.mxu0
    %v136 = vadd.f32 %v35, %v135
    %v137 = vpop.f32.mrf.mxu0
    %138 = vmatprep.mubr.f32.mxu0 0.0
    %139 = vmatmul.mubr.f32.gmra.mxu0 %v55
    %v140 = vpop.f32.mrf.mxu0
    %v141 = vadd.f32 %v40, %v140
    %v142 = vpop.f32.mrf.mxu0
    %143 = vmatprep.mubr.f32.mxu0 0.0
    %144 = vmatmul.mubr.f32.gmra.mxu0 %v58
    %v145 = vpop.f32.mrf.mxu0
    %v146 = vadd.f32 %v45, %v145
    %v147 = vpop.f32.mrf.mxu0
    %148 = vdwg.mxu0
    %v149 = vand.u32 2147483647, %v131
    %vm150 = vcmp.le.f32.partialorder %v149, 0.7853982
    %vm151 = vcmp.lt.s32.totalorder %v131, 0
    %v152 = vand.u32 %v131, 2139095040
    %v153 = vshrl.u32 %v152, 23
    %v154 = vsub.s32 %v153, 127
    %v155 = vand.u32 2147483647, %v131
    %v156 = vand.u32 %v155, 8388607
    %v157 = vor.u32 %v156, 8388608
    %v158 = vsub.s32 0, %v157
    %v159 = vadd.s32 %v154, 1
    %vm160 = vcmp.gt.s32.totalorder %v159, 0
    %v161 = vsel %vm160, %v159, 0
    %v162 = vshrl.u32 %v161, 5
    %v163 = vand.u32 %v161, 31
    %v164 = vsub.s32 32, %v163
    %v165 = vshrl.u32 683565275, %v164
    %v166 = vshll.u32 683565275, %v163
    %v167 = vshrl.u32 2475754826, %v164
    %v168 = vor.u32 %v166, %v167
    %v169 = vshll.u32 2475754826, %v163
    %v170 = vshrl.u32 2131351028, %v164
    %v171 = vor.u32 %v169, %v170
    %v172 = vshll.u32 2131351028, %v163
    %v173 = vshrl.u32 2102212464, %v164
    %v174 = vor.u32 %v172, %v173
    %v175 = vshll.u32 2102212464, %v163
    %v176 = vshrl.u32 920167782, %v164
    %v177 = vor.u32 %v175, %v176
    %v178 = vshll.u32 920167782, %v163
    %v179 = vshrl.u32 1326507024, %v164
    %v180 = vor.u32 %v178, %v179
    %vm181 = vcmp.lt.s32.totalorder %v162, 1
    %vm182 = vcmp.lt.s32.totalorder %v162, 2
    %vm183 = vcmp.lt.s32.totalorder %v162, 3
    %vm184 = vcmp.lt.s32.totalorder %v162, 4
    %v185 = vsel %vm181, %v165, %v168
    %v186 = vsel %vm184, %v174, 2102212464
    %v187 = vsel %vm183, %v171, %v186
    %v188 = vsel %vm182, %v185, %v187
    %v189 = vsel %vm181, %v168, %v171
    %v190 = vsel %vm184, %v177, 920167782
    %v191 = vsel %vm183, %v174, %v190
    %v192 = vsel %vm182, %v189, %v191
    %v193 = vsel %vm181, %v171, %v174
    %v194 = vsel %vm184, %v180, 1326507024
    %v195 = vsel %vm183, %v177, %v194
    %v196 = vsel %vm182, %v193, %v195
    %v197 = vshll.u32 %v157, 8
    %v198 = vmul.u32.u64.compose %v197, %v196
    %v199 = vextract.low.u32 %v198
    %v200 = vextract.high.u32 %v198
    %v201 = vmul.u32.u64.compose %v197, %v192
    %v202 = vextract.low.u32 %v201
    %v203 = vextract.high.u32 %v201
    %v204 = vmul.u32 %v197, %v188
    %v205 = vadd.s32 %v200, %v202
    %vm206 = vc.u32 %v200, %v202
    %v207 = vadd.s32 %v203, 1
    %v208 = vsel %vm206, %v207, %v203
    %v209 = vadd.s32 %v204, %v208
    %v210 = vadd.s32 %v209, 536870912
    %v211 = vshrl.u32 %v210, 30
    %v212 = vshll.u32 %v211, 30
    %v213 = vsub.s32 %v209, %v212
    %vm214 = vcmp.lt.s32.totalorder %v213, 0
    %v215 = vsub.s32 0, %v213
    %v216 = vsel %vm214, %v215, %v213
    %v217 = vclz %v216
    %v218 = vsub.s32 %v217, 2
    %vm219 = vcmp.gt.s32.totalorder 0, %v218
    %v220 = vsel %vm219, 0, %v218
    %v221 = vsub.s32 32, %v220
    %v222 = vshll.u32 %v213, %v220
    %v223 = vshrl.u32 %v205, %v221
    %v224 = vor.u32 %v222, %v223
    %v225 = vsub.s32 4294967266, %v220
    %v226 = vadd.s32 %v225, 127
    %v227 = vshll.u32 %v226, 23
    %v228 = vor.u32 4788187, %v227
    %v229 = vand.u32 2147483647, %v228
    %v231 = vcvt.s32.f32 %v224
    %v232 = vmul.f32 %v231, %v229
    %v233 = vxor.u32 %v232, 2147483648
    %v234 = vsel %vm151, %v233, %v232
    %v235 = vsub.s32 4, %v211
    %v236 = vsel %vm151, %v235, %v211
    %v237 = vsel %vm150, %v131, %v234
    %v238 = vsel %vm150, 0, %v236
    %v239 = vcosq.f32.pop %v237
    %v240 = vsinq.f32.pop %v237
    %vm241 = vweird.f32 %v131
    %v242 = vand.u32 %v238, 3
    %vm243 = vcmp.lt.s32.totalorder %v242, 2
    %vm244 = vcmp.eq.s32.totalorder %v242, 0
    %v245 = vxor.u32 %v240, 2147483648
    %v246 = vsel %vm244, %v239, %v245
    %vm247 = vcmp.eq.s32.totalorder %v242, 2
    %v248 = vxor.u32 %v239, 2147483648
    %v249 = vsel %vm247, %v248, %v240
    %v250 = vsel %vm243, %v246, %v249
    %v251 = vsel %vm241, nan, %v250
    %v252 = vand.u32 2147483647, %v136
    %vm253 = vcmp.le.f32.partialorder %v252, 0.7853982
    %vm254 = vcmp.lt.s32.totalorder %v136, 0
    %v255 = vand.u32 %v136, 2139095040
    %v256 = vshrl.u32 %v255, 23
    %v257 = vsub.s32 %v256, 127
    %v258 = vand.u32 2147483647, %v136
    %v259 = vand.u32 %v258, 8388607
    %v260 = vor.u32 %v259, 8388608
    %v261 = vsub.s32 0, %v260
    %v262 = vadd.s32 %v257, 1
    %vm263 = vcmp.gt.s32.totalorder %v262, 0
    %v264 = vsel %vm263, %v262, 0
    %v265 = vshrl.u32 %v264, 5
    %v266 = vand.u32 %v264, 31
    %v267 = vsub.s32 32, %v266
    %v268 = vshrl.u32 683565275, %v267
    %v269 = vshll.u32 683565275, %v266
    %v270 = vshrl.u32 2475754826, %v267
    %v271 = vor.u32 %v269, %v270
    %v272 = vshll.u32 2475754826, %v266
    %v273 = vshrl.u32 2131351028, %v267
    %v274 = vor.u32 %v272, %v273
    %v275 = vshll.u32 2131351028, %v266
    %v276 = vshrl.u32 2102212464, %v267
    %v277 = vor.u32 %v275, %v276
    %v278 = vshll.u32 2102212464, %v266
    %v279 = vshrl.u32 920167782, %v267
    %v280 = vor.u32 %v278, %v279
    %v281 = vshll.u32 920167782, %v266
    %v282 = vshrl.u32 1326507024, %v267
    %v283 = vor.u32 %v281, %v282
    %vm284 = vcmp.lt.s32.totalorder %v265, 1
    %vm285 = vcmp.lt.s32.totalorder %v265, 2
    %vm286 = vcmp.lt.s32.totalorder %v265, 3
    %vm287 = vcmp.lt.s32.totalorder %v265, 4
    %v288 = vsel %vm284, %v268, %v271
    %v289 = vsel %vm287, %v277, 2102212464
    %v290 = vsel %vm286, %v274, %v289
    %v291 = vsel %vm285, %v288, %v290
    %v292 = vsel %vm284, %v271, %v274
    %v293 = vsel %vm287, %v280, 920167782
    %v294 = vsel %vm286, %v277, %v293
    %v295 = vsel %vm285, %v292, %v294
    %v296 = vsel %vm284, %v274, %v277
    %v297 = vsel %vm287, %v283, 1326507024
    %v298 = vsel %vm286, %v280, %v297
    %v299 = vsel %vm285, %v296, %v298
    %v300 = vshll.u32 %v260, 8
    %v301 = vmul.u32.u64.compose %v300, %v299
    %v302 = vextract.low.u32 %v301
    %v303 = vextract.high.u32 %v301
    %v304 = vmul.u32.u64.compose %v300, %v295
    %v305 = vextract.low.u32 %v304
    %v306 = vextract.high.u32 %v304
    %v307 = vmul.u32 %v300, %v291
    %v308 = vadd.s32 %v303, %v305
    %vm309 = vc.u32 %v303, %v305
    %v310 = vadd.s32 %v306, 1
    %v311 = vsel %vm309, %v310, %v306
    %v312 = vadd.s32 %v307, %v311
    %v313 = vadd.s32 %v312, 536870912
    %v314 = vshrl.u32 %v313, 30
    %v315 = vshll.u32 %v314, 30
    %v316 = vsub.s32 %v312, %v315
    %vm317 = vcmp.lt.s32.totalorder %v316, 0
    %v318 = vsub.s32 0, %v316
    %v319 = vsel %vm317, %v318, %v316
    %v320 = vclz %v319
    %v321 = vsub.s32 %v320, 2
    %vm322 = vcmp.gt.s32.totalorder 0, %v321
    %v323 = vsel %vm322, 0, %v321
    %v324 = vsub.s32 32, %v323
    %v325 = vshll.u32 %v316, %v323
    %v326 = vshrl.u32 %v308, %v324
    %v327 = vor.u32 %v325, %v326
    %v328 = vsub.s32 4294967266, %v323
    %v329 = vadd.s32 %v328, 127
    %v330 = vshll.u32 %v329, 23
    %v331 = vor.u32 4788187, %v330
    %v332 = vand.u32 2147483647, %v331
    %v334 = vcvt.s32.f32 %v327
    %v335 = vmul.f32 %v334, %v332
    %v336 = vxor.u32 %v335, 2147483648
    %v337 = vsel %vm254, %v336, %v335
    %v338 = vsub.s32 4, %v314
    %v339 = vsel %vm254, %v338, %v314
    %v340 = vsel %vm253, %v136, %v337
    %v341 = vsel %vm253, 0, %v339
    %v342 = vcosq.f32.pop %v340
    %v343 = vsinq.f32.pop %v340
    %vm344 = vweird.f32 %v136
    %v345 = vand.u32 %v341, 3
    %vm346 = vcmp.lt.s32.totalorder %v345, 2
    %vm347 = vcmp.eq.s32.totalorder %v345, 0
    %v348 = vxor.u32 %v343, 2147483648
    %v349 = vsel %vm347, %v342, %v348
    %vm350 = vcmp.eq.s32.totalorder %v345, 2
    %v351 = vxor.u32 %v342, 2147483648
    %v352 = vsel %vm350, %v351, %v343
    %v353 = vsel %vm346, %v349, %v352
    %v354 = vsel %vm344, nan, %v353
    %v355 = vand.u32 2147483647, %v141
    %vm356 = vcmp.le.f32.partialorder %v355, 0.7853982
    %vm357 = vcmp.lt.s32.totalorder %v141, 0
    %v358 = vand.u32 %v141, 2139095040
    %v359 = vshrl.u32 %v358, 23
    %v360 = vsub.s32 %v359, 127
    %v361 = vand.u32 2147483647, %v141
    %v362 = vand.u32 %v361, 8388607
    %v363 = vor.u32 %v362, 8388608
    %v364 = vsub.s32 0, %v363
    %v365 = vadd.s32 %v360, 1
    %vm366 = vcmp.gt.s32.totalorder %v365, 0
    %v367 = vsel %vm366, %v365, 0
    %v368 = vshrl.u32 %v367, 5
    %v369 = vand.u32 %v367, 31
    %v370 = vsub.s32 32, %v369
    %v371 = vshrl.u32 683565275, %v370
    %v372 = vshll.u32 683565275, %v369
    %v373 = vshrl.u32 2475754826, %v370
    %v374 = vor.u32 %v372, %v373
    %v375 = vshll.u32 2475754826, %v369
    %v376 = vshrl.u32 2131351028, %v370
    %v377 = vor.u32 %v375, %v376
    %v378 = vshll.u32 2131351028, %v369
    %v379 = vshrl.u32 2102212464, %v370
    %v380 = vor.u32 %v378, %v379
    %v381 = vshll.u32 2102212464, %v369
    %v382 = vshrl.u32 920167782, %v370
    %v383 = vor.u32 %v381, %v382
    %v384 = vshll.u32 920167782, %v369
    %v385 = vshrl.u32 1326507024, %v370
    %v386 = vor.u32 %v384, %v385
    %vm387 = vcmp.lt.s32.totalorder %v368, 1
    %vm388 = vcmp.lt.s32.totalorder %v368, 2
    %vm389 = vcmp.lt.s32.totalorder %v368, 3
    %vm390 = vcmp.lt.s32.totalorder %v368, 4
    %v391 = vsel %vm387, %v371, %v374
    %v392 = vsel %vm390, %v380, 2102212464
    %v393 = vsel %vm389, %v377, %v392
    %v394 = vsel %vm388, %v391, %v393
    %v395 = vsel %vm387, %v374, %v377
    %v396 = vsel %vm390, %v383, 920167782
    %v397 = vsel %vm389, %v380, %v396
    %v398 = vsel %vm388, %v395, %v397
    %v399 = vsel %vm387, %v377, %v380
    %v400 = vsel %vm390, %v386, 1326507024
    %v401 = vsel %vm389, %v383, %v400
    %v402 = vsel %vm388, %v399, %v401
    %v403 = vshll.u32 %v363, 8
    %v404 = vmul.u32.u64.compose %v403, %v402
    %v405 = vextract.low.u32 %v404
    %v406 = vextract.high.u32 %v404
    %v407 = vmul.u32.u64.compose %v403, %v398
    %v408 = vextract.low.u32 %v407
    %v409 = vextract.high.u32 %v407
    %v410 = vmul.u32 %v403, %v394
    %v411 = vadd.s32 %v406, %v408
    %vm412 = vc.u32 %v406, %v408
    %v413 = vadd.s32 %v409, 1
    %v414 = vsel %vm412, %v413, %v409
    %v415 = vadd.s32 %v410, %v414
    %v416 = vadd.s32 %v415, 536870912
    %v417 = vshrl.u32 %v416, 30
    %v418 = vshll.u32 %v417, 30
    %v419 = vsub.s32 %v415, %v418
    %vm420 = vcmp.lt.s32.totalorder %v419, 0
    %v421 = vsub.s32 0, %v419
    %v422 = vsel %vm420, %v421, %v419
    %v423 = vclz %v422
    %v424 = vsub.s32 %v423, 2
    %vm425 = vcmp.gt.s32.totalorder 0, %v424
    %v426 = vsel %vm425, 0, %v424
    %v427 = vsub.s32 32, %v426
    %v428 = vshll.u32 %v419, %v426
    %v429 = vshrl.u32 %v411, %v427
    %v430 = vor.u32 %v428, %v429
    %v431 = vsub.s32 4294967266, %v426
    %v432 = vadd.s32 %v431, 127
    %v433 = vshll.u32 %v432, 23
    %v434 = vor.u32 4788187, %v433
    %v435 = vand.u32 2147483647, %v434
    %v437 = vcvt.s32.f32 %v430
    %v438 = vmul.f32 %v437, %v435
    %v439 = vxor.u32 %v438, 2147483648
    %v440 = vsel %vm357, %v439, %v438
    %v441 = vsub.s32 4, %v417
    %v442 = vsel %vm357, %v441, %v417
    %v443 = vsel %vm356, %v141, %v440
    %v444 = vsel %vm356, 0, %v442
    %v445 = vcosq.f32.pop %v443
    %v446 = vsinq.f32.pop %v443
    %vm447 = vweird.f32 %v141
    %v448 = vand.u32 %v444, 3
    %vm449 = vcmp.lt.s32.totalorder %v448, 2
    %vm450 = vcmp.eq.s32.totalorder %v448, 0
    %v451 = vxor.u32 %v446, 2147483648
    %v452 = vsel %vm450, %v445, %v451
    %vm453 = vcmp.eq.s32.totalorder %v448, 2
    %v454 = vxor.u32 %v445, 2147483648
    %v455 = vsel %vm453, %v454, %v446
    %v456 = vsel %vm449, %v452, %v455
    %v457 = vsel %vm447, nan, %v456
    %v458 = vand.u32 2147483647, %v146
    %vm459 = vcmp.le.f32.partialorder %v458, 0.7853982
    %vm460 = vcmp.lt.s32.totalorder %v146, 0
    %v461 = vand.u32 %v146, 2139095040
    %v462 = vshrl.u32 %v461, 23
    %v463 = vsub.s32 %v462, 127
    %v464 = vand.u32 2147483647, %v146
    %v465 = vand.u32 %v464, 8388607
    %v466 = vor.u32 %v465, 8388608
    %v467 = vsub.s32 0, %v466
    %v468 = vadd.s32 %v463, 1
    %vm469 = vcmp.gt.s32.totalorder %v468, 0
    %v470 = vsel %vm469, %v468, 0
    %v471 = vshrl.u32 %v470, 5
    %v472 = vand.u32 %v470, 31
    %v473 = vsub.s32 32, %v472
    %v474 = vshrl.u32 683565275, %v473
    %v475 = vshll.u32 683565275, %v472
    %v476 = vshrl.u32 2475754826, %v473
    %v477 = vor.u32 %v475, %v476
    %v478 = vshll.u32 2475754826, %v472
    %v479 = vshrl.u32 2131351028, %v473
    %v480 = vor.u32 %v478, %v479
    %v481 = vshll.u32 2131351028, %v472
    %v482 = vshrl.u32 2102212464, %v473
    %v483 = vor.u32 %v481, %v482
    %v484 = vshll.u32 2102212464, %v472
    %v485 = vshrl.u32 920167782, %v473
    %v486 = vor.u32 %v484, %v485
    %v487 = vshll.u32 920167782, %v472
    %v488 = vshrl.u32 1326507024, %v473
    %v489 = vor.u32 %v487, %v488
    %vm490 = vcmp.lt.s32.totalorder %v471, 1
    %vm491 = vcmp.lt.s32.totalorder %v471, 2
    %vm492 = vcmp.lt.s32.totalorder %v471, 3
    %vm493 = vcmp.lt.s32.totalorder %v471, 4
    %v494 = vsel %vm490, %v474, %v477
    %v495 = vsel %vm493, %v483, 2102212464
    %v496 = vsel %vm492, %v480, %v495
    %v497 = vsel %vm491, %v494, %v496
    %v498 = vsel %vm490, %v477, %v480
    %v499 = vsel %vm493, %v486, 920167782
    %v500 = vsel %vm492, %v483, %v499
    %v501 = vsel %vm491, %v498, %v500
    %v502 = vsel %vm490, %v480, %v483
    %v503 = vsel %vm493, %v489, 1326507024
    %v504 = vsel %vm492, %v486, %v503
    %v505 = vsel %vm491, %v502, %v504
    %v506 = vshll.u32 %v466, 8
    %v507 = vmul.u32.u64.compose %v506, %v505
    %v508 = vextract.low.u32 %v507
    %v509 = vextract.high.u32 %v507
    %v510 = vmul.u32.u64.compose %v506, %v501
    %v511 = vextract.low.u32 %v510
    %v512 = vextract.high.u32 %v510
    %v513 = vmul.u32 %v506, %v497
    %v514 = vadd.s32 %v509, %v511
    %vm515 = vc.u32 %v509, %v511
    %v516 = vadd.s32 %v512, 1
    %v517 = vsel %vm515, %v516, %v512
    %v518 = vadd.s32 %v513, %v517
    %v519 = vadd.s32 %v518, 536870912
    %v520 = vshrl.u32 %v519, 30
    %v521 = vshll.u32 %v520, 30
    %v522 = vsub.s32 %v518, %v521
    %vm523 = vcmp.lt.s32.totalorder %v522, 0
    %v524 = vsub.s32 0, %v522
    %v525 = vsel %vm523, %v524, %v522
    %v526 = vclz %v525
    %v527 = vsub.s32 %v526, 2
    %vm528 = vcmp.gt.s32.totalorder 0, %v527
    %v529 = vsel %vm528, 0, %v527
    %v530 = vsub.s32 32, %v529
    %v531 = vshll.u32 %v522, %v529
    %v532 = vshrl.u32 %v514, %v530
    %v533 = vor.u32 %v531, %v532
    %v534 = vsub.s32 4294967266, %v529
    %v535 = vadd.s32 %v534, 127
    %v536 = vshll.u32 %v535, 23
    %v537 = vor.u32 4788187, %v536
    %v538 = vand.u32 2147483647, %v537
    %v540 = vcvt.s32.f32 %v533
    %v541 = vmul.f32 %v540, %v538
    %v542 = vxor.u32 %v541, 2147483648
    %v543 = vsel %vm460, %v542, %v541
    %v544 = vsub.s32 4, %v520
    %v545 = vsel %vm460, %v544, %v520
    %v546 = vsel %vm459, %v146, %v543
    %v547 = vsel %vm459, 0, %v545
    %v548 = vcosq.f32.pop %v546
    %v549 = vsinq.f32.pop %v546
    %vm550 = vweird.f32 %v146
    %v551 = vand.u32 %v547, 3
    %vm552 = vcmp.lt.s32.totalorder %v551, 2
    %vm553 = vcmp.eq.s32.totalorder %v551, 0
    %v554 = vxor.u32 %v549, 2147483648
    %v555 = vsel %vm553, %v548, %v554
    %vm556 = vcmp.eq.s32.totalorder %v551, 2
    %v557 = vxor.u32 %v548, 2147483648
    %v558 = vsel %vm556, %v557, %v549
    %v559 = vsel %vm552, %v555, %v558
    %v560 = vsel %vm550, nan, %v559
    %v561 = vld [vmem:[%s3] sm:$0xff]
    %v562 = vld [vmem:[%s3 + $0x8] sm:$0xff]
    %v563 = vld [vmem:[%s3 + $0x10] sm:$0xff]
    %v564 = vld [vmem:[%s3 + $0x18] sm:$0xff]
    %566 = vset.pattern.permute.xlu0 0
    %567 = vperm.xlu0 %566, %v561
    %v568 = vpop.permute.xlu0 %567
    %571 = vset.pattern.permute.xlu0 0
    %572 = vperm.xlu0 %571, %v562
    %v573 = vpop.permute.xlu0 %572
    %576 = vset.pattern.permute.xlu0 0
    %577 = vperm.xlu0 %576, %v563
    %v578 = vpop.permute.xlu0 %577
    %581 = vset.pattern.permute.xlu0 0
    %582 = vperm.xlu0 %581, %v564
    %v583 = vpop.permute.xlu0 %582
    %v585 = vmul.f32 %v251, %v568
    %v586 = vmul.f32 %v354, %v573
    %v587 = vmul.f32 %v457, %v578
    %v588 = vmul.f32 %v560, %v583
    %vm589 = vcmask 64512
    %v590 = vsel %vm589, %v585, 0.0
    %v591 = vsel %vm589, %v586, 0.0
    %v592 = vadd.f32 %v590, %v591
    %v593 = vsel %vm589, %v587, 0.0
    %v594 = vadd.f32 %v592, %v593
    %v595 = vsel %vm589, %v588, 0.0
    %v596 = vadd.f32 %v594, %v595
    %v597 = vrot.slane %v596, 4
    %v598 = vadd.f32 %v596, %v597
    %v599 = vrot.slane %v598, 2
    %v600 = vadd.f32 %v598, %v599
    %v601 = vrot.slane %v600, 1
    %v602 = vadd.f32 %v600, %v601
    %vm603 = vcmask 57344
    %604 = vst.msk [vmem:[#allocation2] sm:$0x1] %vm603, %v602
    // Predicated region
    $region18: #{tpu_custom_call.1} parent=1 // pred_check
      _
    $region19: #{tpu_custom_call.1} parent=1 // pred_check_branch
      %606 = sbr.rel (0) target = $region21
    $region20: #{tpu_custom_call.1} parent=1 // pred_region
      %s608 = ssub.s32 16, 16
      %609 = vsyncadd [#allocation3], %s608
      %s611 = sshll.u32 [#allocation2], 4
      %s612 = int_to_ptr.vmem [resolvable:$true] %s611
      %614 = dma.vmem_to_hbm [thread:$0]  %s612, 16, %s4, [#allocation3]
    $region21: #{tpu_custom_call.1} parent=1 // pred_fallthru
      _
    // Predicated region
    $region22: #{tpu_custom_call.1} parent=1 // pred_check
      _
    $region23: #{tpu_custom_call.1} parent=1 // pred_check_branch
      %616 = sbr.rel (0) target = $region25
    $region24: #{tpu_custom_call.1} parent=1 // pred_region
      %617 = dma.done [#allocation3], 16
    $region25: #{tpu_custom_call.1} parent=1 // pred_fallthru
      _
    %618 = vsyncpa [#allocation3], 1

</llo_original>
